<compile_context>
chip_gen: v7x
topology: tpu7x:2x2x1
jax: 0.10.0
libtpu: 0.0.40
codegen_flags: <defaults>
</compile_context>

<pallas_src>
import jax
import jax.numpy as jnp
from jax import lax
from jax.experimental import pallas as pl
from jax.experimental.pallas import tpu as pltpu

TEMPERATURE = 0.07
BASE_TEMPERATURE = 0.07


def _pick_block(n, preferred=128):
    for b in (preferred, 512, 256, 128, 64, 32, 16, 8):
        if b <= n and n % b == 0:
            return b
    return n


# ----------------------------- encoder kernel --------------------------------
def encoder_kernel(x_ref, wb_ref, bb_ref, w1_ref, b1_ref, w2_ref, b2_ref, z_ref):
    # backbone (Linear), then SupCon Projector: Linear -> ReLU -> Linear.
    # All matmuls on the MXU with f32 accumulation; weights stay resident in
    # VMEM across the row-tile grid.
    h = jnp.dot(x_ref[...], wb_ref[...], preferred_element_type=jnp.float32) + bb_ref[...]
    h = jnp.dot(h, w1_ref[...], preferred_element_type=jnp.float32) + b1_ref[...]
    h = jnp.maximum(h, 0.0)
    z_ref[...] = jnp.dot(h, w2_ref[...], preferred_element_type=jnp.float32) + b2_ref[...]


def encode(x_flat, params, *, block_rows=None):
    n, in_dim = x_flat.shape
    feat = params["wb"].shape[1]
    proj = params["w2"].shape[1]
    if block_rows is None:
        block_rows = _pick_block(n)
    assert n % block_rows == 0, (n, block_rows)

    return pl.pallas_call(
        encoder_kernel,
        out_shape=jax.ShapeDtypeStruct((n, proj), jnp.float32),
        grid=(n // block_rows,),
        in_specs=[
            pl.BlockSpec((block_rows, in_dim), lambda i: (i, 0)),  # x row tile
            pl.BlockSpec((in_dim, feat), lambda i: (0, 0)),        # resident weights
            pl.BlockSpec((1, feat), lambda i: (0, 0)),
            pl.BlockSpec((feat, feat), lambda i: (0, 0)),
            pl.BlockSpec((1, feat), lambda i: (0, 0)),
            pl.BlockSpec((feat, proj), lambda i: (0, 0)),
            pl.BlockSpec((1, proj), lambda i: (0, 0)),
        ],
        out_specs=pl.BlockSpec((block_rows, proj), lambda i: (i, 0)),
        compiler_params=pltpu.CompilerParams(dimension_semantics=("parallel",)),
    )(x_flat, params["wb"], params["bb"], params["w1"], params["b1"],
      params["w2"], params["b2"])


# ------------------------------ SupCon loss kernel ----------------------------
def supcon_loss_kernel(fr_ref, fc_ref, lr_ref, lc_ref, out_ref,
                       m_acc, l_acc, cnt_acc, msim_acc):
    i = pl.program_id(0)          # anchor (row) tile
    j = pl.program_id(1)          # contrast (column) tile
    nj = pl.num_programs(1)

    @pl.when(j == 0)
    def _init():
        m_acc[...] = jnp.full(m_acc.shape, -jnp.inf, dtype=jnp.float32)
        l_acc[...] = jnp.zeros(l_acc.shape, dtype=jnp.float32)
        cnt_acc[...] = jnp.zeros(cnt_acc.shape, dtype=jnp.float32)
        msim_acc[...] = jnp.zeros(msim_acc.shape, dtype=jnp.float32)

    fr = fr_ref[...]                       # (TR, D)
    fc = fc_ref[...]                       # (TC, D)
    tr, tc = fr.shape[0], fc.shape[0]

    # anchor . contrast^T / temperature -- contract the feature axis of both
    # operands (no explicit transpose / XLU relayout before the MXU).
    sim = lax.dot_general(fr, fc, (((1,), (1,)), ((), ())),
                          preferred_element_type=jnp.float32) * (1.0 / TEMPERATURE)

    # Per-tile masks only (TR x TC), never N x N.
    row_ids = i * tr + lax.broadcasted_iota(jnp.int32, (tr, tc), 0)
    col_ids = j * tc + lax.broadcasted_iota(jnp.int32, (tr, tc), 1)
    not_self = row_ids != col_ids                                  # logits_mask tile
    same_label = lr_ref[...] == lc_ref[0]                          # (TR,1)==(1,TC) int32
    pos = jnp.where(jnp.logical_and(same_label, not_self), 1.0, 0.0)

    # Online-softmax accumulation over contrast tiles.
    m_prev = m_acc[...]
    m_new = jnp.maximum(m_prev, jnp.max(sim, axis=1, keepdims=True))
    p = jnp.where(not_self, jnp.exp(sim - m_new), 0.0)             # exp_logits tile
    l_acc[...] = jnp.exp(m_prev - m_new) * l_acc[...] + jnp.sum(p, axis=1, keepdims=True)
    cnt_acc[...] += jnp.sum(pos, axis=1, keepdims=True)            # mask.sum(1)
    msim_acc[...] += jnp.sum(pos * sim, axis=1, keepdims=True)     # (mask * sim).sum(1)
    m_acc[...] = m_new

    @pl.when(j == nj - 1)
    def _finalize():
        # sum_j mask * log_prob = sum_j mask*sim - cnt * log(sum_j!=i exp(sim))
        # (the row-max shift cancels exactly; it is only used for stability).
        log_denom = m_acc[...] + jnp.log(l_acc[...])
        mean_log_prob_pos = msim_acc[...] / cnt_acc[...] - log_denom
        out_ref[...] = (-(TEMPERATURE / BASE_TEMPERATURE)) * mean_log_prob_pos


def sup_con_loss(z_all, labels_all, *, block_rows=None, block_cols=None):
    n, d = z_all.shape
    if block_rows is None:
        block_rows = _pick_block(n)
    if block_cols is None:
        block_cols = _pick_block(n)
    assert n % block_rows == 0 and n % block_cols == 0, (n, block_rows, block_cols)
    gi, gj = n // block_rows, n // block_cols

    z32 = z_all.astype(jnp.float32)
    lab = labels_all.astype(jnp.int32)
    lab_anchor = lab.reshape(n, 1)                     # row-tile labels, (TR, 1) blocks
    lab_contrast = lab.reshape(gj, 1, block_cols)      # lane-dense (1, 1, TC) blocks

    per_anchor = pl.pallas_call(
        supcon_loss_kernel,
        out_shape=jax.ShapeDtypeStruct((n, 1), jnp.float32),
        grid=(gi, gj),
        in_specs=[
            pl.BlockSpec((block_rows, d), lambda i, j: (i, 0)),        # anchor rows
            pl.BlockSpec((block_cols, d), lambda i, j: (j, 0)),        # contrast cols
            pl.BlockSpec((block_rows, 1), lambda i, j: (i, 0)),        # anchor labels
            pl.BlockSpec((1, 1, block_cols), lambda i, j: (j, 0, 0)),  # contrast labels
        ],
        out_specs=pl.BlockSpec((block_rows, 1), lambda i, j: (i, 0)),
        scratch_shapes=[pltpu.VMEM((block_rows, 1), jnp.float32)] * 4,
        compiler_params=pltpu.CompilerParams(
            dimension_semantics=("parallel", "arbitrary")),
    )(z32, z32, lab_anchor, lab_contrast)

    # loss.view(anchor_count, bsz).mean() == mean over all 2*bsz anchors.
    return jnp.mean(per_anchor)


# --------------------------------- glue ---------------------------------------
def augment_views(x, mean, std):
    # TODO(synk): RandomResizedCrop / ColorJitter / RandomGrayscale / random flip are
    # stochastic data augmentations with no clean Pallas equivalent; we use two
    # deterministic members of the family: Normalize (view 1) and horizontal flip +
    # Normalize (view 2).
    mean = jnp.asarray(mean, jnp.float32).reshape(1, -1, 1, 1)
    std = jnp.asarray(std, jnp.float32).reshape(1, -1, 1, 1)
    x1 = (x - mean) / std
    x2 = (x[:, :, :, ::-1] - mean) / std
    return x1, x2


def init_params(key, in_dim, feature_size, projection_dim):
    # TODO(synk): the real backbone is an external nn.Module; approximated here by a
    # single Linear(in_dim -> feature_size) so the encoder stays a pure matmul chain.
    ks = jax.random.split(key, 6)

    def lin(kw, kb, fan_in, fan_out):
        bound = 1.0 / jnp.sqrt(jnp.float32(fan_in))
        w = jax.random.uniform(kw, (fan_in, fan_out), jnp.float32, -bound, bound)
        b = jax.random.uniform(kb, (1, fan_out), jnp.float32, -bound, bound)
        return w, b

    wb, bb = lin(ks[0], ks[1], in_dim, feature_size)
    w1, b1 = lin(ks[2], ks[3], feature_size, feature_size)
    w2, b2 = lin(ks[4], ks[5], feature_size, projection_dim)
    return dict(wb=wb, bb=bb, w1=w1, b1=b1, w2=w2, b2=b2)


def supcon_forward(x, y, params, mean=(0.5,), std=(0.229, 0.224, 0.225),
                   encoder_block_rows=None, loss_block=None):
    x1, x2 = augment_views(x, mean, std)
    b = x.shape[0]
    # contrast_feature = cat(unbind(features, dim=1), dim=0) -> [view1; view2]
    x_all = jnp.concatenate([x1.reshape(b, -1), x2.reshape(b, -1)], axis=0)
    z_all = encode(x_all, params, block_rows=encoder_block_rows)
    y_all = jnp.concatenate([y, y], axis=0)
    return sup_con_loss(z_all, y_all, block_rows=loss_block, block_cols=loss_block)


# --------------------------- pure-JAX reference --------------------------------
def _ref_forward(x, y, params, mean=(0.5,), std=(0.229, 0.224, 0.225)):
    x1, x2 = augment_views(x, mean, std)
    b = x.shape[0]
    x_all = jnp.concatenate([x1.reshape(b, -1), x2.reshape(b, -1)], axis=0)
    h = x_all @ params["wb"] + params["bb"]
    h = jnp.maximum(h @ params["w1"] + params["b1"], 0.0)
    z = h @ params["w2"] + params["b2"]
    y_all = jnp.concatenate([y, y], axis=0)
    n = z.shape[0]
    sim = z @ z.T / TEMPERATURE
    logits = sim - sim.max(axis=1, keepdims=True)
    logits_mask = 1.0 - jnp.eye(n, dtype=jnp.float32)
    mask = (y_all[:, None] == y_all[None, :]).astype(jnp.float32) * logits_mask
    exp_logits = jnp.exp(logits) * logits_mask
    log_prob = logits - jnp.log(exp_logits.sum(1, keepdims=True))
    mlpp = (mask * log_prob).sum(1) / mask.sum(1)
    return (-(TEMPERATURE / BASE_TEMPERATURE) * mlpp).mean()


if __name__ == "__main__":
    # NOTE: at production scale keep 2*B >= 128 (v5e) / 256 (v6e, v7x) so the
    # matmul M dimension fills an MXU tile; B=8 here is just a smoke test.
    B, C, H, W = 8, 3, 16, 16
    FEATURE_SIZE, PROJECTION_DIM = 256, 128
    in_dim = C * H * W

    key = jax.random.PRNGKey(0)
    kx, ky, kp = jax.random.split(key, 3)
    x = jax.random.uniform(kx, (B, C, H, W), jnp.float32)
    y = jax.random.randint(ky, (B,), 0, 4, jnp.int32)
    params = init_params(kp, in_dim, FEATURE_SIZE, PROJECTION_DIM)

    # Multi-tile path (exercises the 2-D loss grid and the encoder row grid).
    loss_tiled = jax.block_until_ready(
        supcon_forward(x, y, params, encoder_block_rows=8, loss_block=8))
    # Default (single-tile-per-axis) path.
    loss_full = jax.block_until_ready(supcon_forward(x, y, params))

    ref = jax.block_until_ready(_ref_forward(x, y, params))
    assert jnp.isfinite(loss_tiled), "loss is not finite"
    assert jnp.allclose(loss_tiled, ref, rtol=1e-3, atol=1e-3), (loss_tiled, ref)
    assert jnp.allclose(loss_full, ref, rtol=1e-3, atol=1e-3), (loss_full, ref)

    print("KERNEL_OK")
</pallas_src>

<mosaic_0001>
module attributes {stable_mosaic.version = 11 : i64} {
  func.func @encoder_kernel(%arg0: i32, %arg1: memref<8x768xf32, #tpu.memory_space<vmem>>, %arg2: memref<768x256xf32, #tpu.memory_space<vmem>>, %arg3: memref<1x256xf32, #tpu.memory_space<vmem>>, %arg4: memref<256x256xf32, #tpu.memory_space<vmem>>, %arg5: memref<1x256xf32, #tpu.memory_space<vmem>>, %arg6: memref<256x128xf32, #tpu.memory_space<vmem>>, %arg7: memref<1x128xf32, #tpu.memory_space<vmem>>, %arg8: memref<8x128xf32, #tpu.memory_space<vmem>>) attributes {dimension_semantics = [#tpu.dimension_semantics<parallel>], iteration_bounds = array<i64: 2>, scalar_prefetch = 0 : i64, scratch_operands = 0 : i64, tpu.core_type = #tpu.core_type<tc>, window_params = [{transform_indices = @transform_0, window_bounds = array<i64: 8, 768>}, {pipeline_mode = #tpu.pipeline_mode<synchronous>, transform_indices = @transform_1, window_bounds = array<i64: 768, 256>}, {pipeline_mode = #tpu.pipeline_mode<synchronous>, transform_indices = @transform_2, window_bounds = array<i64: 1, 256>}, {pipeline_mode = #tpu.pipeline_mode<synchronous>, transform_indices = @transform_3, window_bounds = array<i64: 256, 256>}, {pipeline_mode = #tpu.pipeline_mode<synchronous>, transform_indices = @transform_4, window_bounds = array<i64: 1, 256>}, {pipeline_mode = #tpu.pipeline_mode<synchronous>, transform_indices = @transform_5, window_bounds = array<i64: 256, 128>}, {pipeline_mode = #tpu.pipeline_mode<synchronous>, transform_indices = @transform_6, window_bounds = array<i64: 1, 128>}, {transform_indices = @transform_7, window_bounds = array<i64: 8, 128>}]} {
    %c0 = arith.constant 0 : index
    %c0_0 = arith.constant 0 : index
    %0 = vector.load %arg1[%c0, %c0_0] : memref<8x768xf32, #tpu.memory_space<vmem>>, vector<8x768xf32>
    %c0_1 = arith.constant 0 : index
    %c0_2 = arith.constant 0 : index
    %1 = vector.load %arg2[%c0_1, %c0_2] : memref<768x256xf32, #tpu.memory_space<vmem>>, vector<768x256xf32>
    %cst = arith.constant dense<0.000000e+00> : vector<8x256xf32>
    %2 = tpu.matmul %0, %1, %cst {dimension_numbers = #tpu.dot_dimension_numbers<[1], [0], [0], [1], [0, 0, 1, 1], [], []>} : vector<8x768xf32>, vector<768x256xf32>, vector<8x256xf32> -> vector<8x256xf32>
    %c0_3 = arith.constant 0 : index
    %c0_4 = arith.constant 0 : index
    %3 = vector.load %arg3[%c0_3, %c0_4] : memref<1x256xf32, #tpu.memory_space<vmem>>, vector<1x256xf32>
    %4 = vector.broadcast %3 : vector<1x256xf32> to vector<8x256xf32>
    %5 = arith.addf %2, %4 : vector<8x256xf32>
    %c0_5 = arith.constant 0 : index
    %c0_6 = arith.constant 0 : index
    %6 = vector.load %arg4[%c0_5, %c0_6] : memref<256x256xf32, #tpu.memory_space<vmem>>, vector<256x256xf32>
    %cst_7 = arith.constant dense<0.000000e+00> : vector<8x256xf32>
    %7 = tpu.matmul %5, %6, %cst_7 {dimension_numbers = #tpu.dot_dimension_numbers<[1], [0], [0], [1], [0, 0, 1, 1], [], []>} : vector<8x256xf32>, vector<256x256xf32>, vector<8x256xf32> -> vector<8x256xf32>
    %c0_8 = arith.constant 0 : index
    %c0_9 = arith.constant 0 : index
    %8 = vector.load %arg5[%c0_8, %c0_9] : memref<1x256xf32, #tpu.memory_space<vmem>>, vector<1x256xf32>
    %9 = vector.broadcast %8 : vector<1x256xf32> to vector<8x256xf32>
    %10 = arith.addf %7, %9 : vector<8x256xf32>
    %cst_10 = arith.constant 0.000000e+00 : f32
    %11 = vector.broadcast %cst_10 : f32 to vector<8x256xf32>
    %12 = arith.maximumf %10, %11 : vector<8x256xf32>
    %c0_11 = arith.constant 0 : index
    %c0_12 = arith.constant 0 : index
    %13 = vector.load %arg6[%c0_11, %c0_12] : memref<256x128xf32, #tpu.memory_space<vmem>>, vector<256x128xf32>
    %cst_13 = arith.constant dense<0.000000e+00> : vector<8x128xf32>
    %14 = tpu.matmul %12, %13, %cst_13 {dimension_numbers = #tpu.dot_dimension_numbers<[1], [0], [0], [1], [0, 0, 1, 1], [], []>} : vector<8x256xf32>, vector<256x128xf32>, vector<8x128xf32> -> vector<8x128xf32>
    %c0_14 = arith.constant 0 : index
    %c0_15 = arith.constant 0 : index
    %15 = vector.load %arg7[%c0_14, %c0_15] : memref<1x128xf32, #tpu.memory_space<vmem>>, vector<1x128xf32>
    %16 = vector.broadcast %15 : vector<1x128xf32> to vector<8x128xf32>
    %17 = arith.addf %14, %16 : vector<8x128xf32>
    %c0_16 = arith.constant 0 : index
    %c0_17 = arith.constant 0 : index
    %18 = vector.load %arg8[%c0_16, %c0_17] : memref<8x128xf32, #tpu.memory_space<vmem>>, vector<8x128xf32>
    tpu.vector_store %arg8[%c0_16, %c0_17], %17 {strides = array<i32>} : memref<8x128xf32, #tpu.memory_space<vmem>>, vector<8x128xf32>,
    return
  }
  func.func @transform_0(%arg0: i32) -> (i32, i32) {
    %c0_i32 = arith.constant 0 : i32
    %c0_i32_0 = arith.constant 0 : i32
    return %arg0, %c0_i32 : i32, i32
  }
  func.func @transform_1(%arg0: i32) -> (i32, i32) {
    %c0_i32 = arith.constant 0 : i32
    %c0_i32_0 = arith.constant 0 : i32
    %c0_i32_1 = arith.constant 0 : i32
    return %c0_i32, %c0_i32_0 : i32, i32
  }
  func.func @transform_2(%arg0: i32) -> (i32, i32) {
    %c0_i32 = arith.constant 0 : i32
    %c0_i32_0 = arith.constant 0 : i32
    %c0_i32_1 = arith.constant 0 : i32
    return %c0_i32, %c0_i32_0 : i32, i32
  }
  func.func @transform_3(%arg0: i32) -> (i32, i32) {
    %c0_i32 = arith.constant 0 : i32
    %c0_i32_0 = arith.constant 0 : i32
    %c0_i32_1 = arith.constant 0 : i32
    return %c0_i32, %c0_i32_0 : i32, i32
  }
  func.func @transform_4(%arg0: i32) -> (i32, i32) {
    %c0_i32 = arith.constant 0 : i32
    %c0_i32_0 = arith.constant 0 : i32
    %c0_i32_1 = arith.constant 0 : i32
    return %c0_i32, %c0_i32_0 : i32, i32
  }
  func.func @transform_5(%arg0: i32) -> (i32, i32) {
    %c0_i32 = arith.constant 0 : i32
    %c0_i32_0 = arith.constant 0 : i32
    %c0_i32_1 = arith.constant 0 : i32
    return %c0_i32, %c0_i32_0 : i32, i32
  }
  func.func @transform_6(%arg0: i32) -> (i32, i32) {
    %c0_i32 = arith.constant 0 : i32
    %c0_i32_0 = arith.constant 0 : i32
    %c0_i32_1 = arith.constant 0 : i32
    return %c0_i32, %c0_i32_0 : i32, i32
  }
  func.func @transform_7(%arg0: i32) -> (i32, i32) {
    %c0_i32 = arith.constant 0 : i32
    %c0_i32_0 = arith.constant 0 : i32
    return %arg0, %c0_i32 : i32, i32
  }
}

</mosaic_0001>

<llo_original>
// kernel: tpu_custom_call.1
$region0: #{tpu_custom_call.1}
  #allocation0 [shape = 'u32[]', space=smem, size = 0x4, offset = 0x4, fixed_abs, tag = 'smem constant byte address 0x4 - core index']
  #allocation1 [shape = 'u32[144,128]{1,0:T(1,128)}', space=vmem, size = 0x12000, scoped, tag = 'internal scratch']
  %s0 = inlined_call_operand.hbm [shape: f32[16,768], index: 0, kind: input, shape index: {}]
  %s1 = inlined_call_operand.hbm [shape: f32[768,256], index: 1, kind: input, shape index: {}]
  %s2 = inlined_call_operand.vmem [shape: f32[1,256], index: 2, kind: input, shape index: {}]
  %s3 = inlined_call_operand.hbm [shape: f32[256,256], index: 3, kind: input, shape index: {}]
  %s4 = inlined_call_operand.vmem [shape: f32[1,256], index: 4, kind: input, shape index: {}]
  %s5 = inlined_call_operand.hbm [shape: f32[256,128], index: 5, kind: input, shape index: {}]
  %s6 = inlined_call_operand.vmem [shape: f32[1,128], index: 6, kind: input, shape index: {}]
  %s7 = inlined_call_operand.hbm [shape: f32[16,128], index: 7, kind: output, shape index: {}]
  %s8 = sld [smem:[#allocation0]]
  $region77: #{tpu_custom_call.1} parent=0
    _
  %s10 = ssub.s32 1, %s8
  %s11 = scalar_select 0, %s10, %s8
  $region1: #{tpu_custom_call.1} parent=0
    #allocation2 [shape = 'u8[49152]{0}', space=vmem, size = 0xc000, scoped, tag = 'input window, operand 0']
    #allocation3 [shape = 's32[2]{0}', space=sflag, size = 0x8, scoped, tag = 'scoped memory for tpu_custom_call.1']
    #allocation4 [shape = 's32[2]{0}', space=sflag, size = 0x8, scoped, tag = 'scoped memory for tpu_custom_call.1']
    #allocation5 [shape = 'u8[786432]{0}', space=vmem, size = 0xc0000, scoped, tag = 'input window, operand 1, single buffered']
    #allocation6 [shape = 's32[1]{0}', space=sflag, size = 0x4, scoped, tag = 'scoped memory for tpu_custom_call.1']
    #allocation7 [shape = 'u8[262144]{0}', space=vmem, size = 0x40000, scoped, tag = 'input window, operand 3, single buffered']
    #allocation8 [shape = 'u8[131072]{0}', space=vmem, size = 0x20000, scoped, tag = 'input window, operand 5, single buffered']
    #allocation9 [shape = 's32[1]{0}', space=sflag, size = 0x4, scoped, tag = 'scoped memory for tpu_custom_call.1']
    #allocation10 [shape = 'u8[8192]{0}', space=vmem, size = 0x2000, scoped, tag = 'output window, operand 0']
    %12 = vsyncpa [#allocation3], 0
    %s13 = scalar_lea.sflag [#allocation3], 1
    %14 = vsyncpa %s13, 0
    %15 = vsyncpa [#allocation6], 0
    %16 = vsyncpa [#allocation9], 0
    %17 = vsyncpa [#allocation4], 0
    %s18 = scalar_lea.sflag [#allocation4], 1
    %19 = vsyncpa %s18, 0
    loop: start=0, step=1, limit=4
    $region2: #{tpu_custom_call.1} parent=1 // loop_pre_header
      _
    $region3: #{tpu_custom_call.1} parent=1 // loop_header
      %s21 = sphi 0, %s25
      %p22 = scmp.ge.s32.totalorder %s21, 4
      %s31 = sphi 0, %s33
      %s34 = sphi 0, %s31
      %s35 = sphi 0, %s34
      %s51 = sphi 0, %s35
      %s55 = sphi 0, %s55
      %s57 = sphi 0, %s55
      %s58 = sphi 0, %s57
      %s72 = sphi 0, %s58
      %s76 = sphi 0, %s76
      %s78 = sphi 0, %s76
      %s79 = sphi 0, %s78
      %s93 = sphi 0, %s79
      %s97 = sphi 0, %s97
      %s99 = sphi 0, %s97
      %s100 = sphi 0, %s99
      %s114 = sphi 0, %s100
      %s118 = sphi 0, %s118
      %s120 = sphi 0, %s118
      %s121 = sphi 0, %s120
      %s135 = sphi 0, %s121
      %s139 = sphi 0, %s139
      %s141 = sphi 0, %s139
      %s142 = sphi 0, %s141
      %s156 = sphi 0, %s142
      %s160 = sphi 0, %s160
      %s162 = sphi 0, %s160
      %s163 = sphi 0, %s162
      %s177 = sphi 0, %s163
      %s183 = sphi 0, %s185
      %s186 = sphi 0, %s183
      %s187 = sphi 0, %s186
      %s203 = sphi 0, %s187
    $region4: #{tpu_custom_call.1} parent=1 // loop_header_branch
      %24 = sbr.rel (%p22) target = $region8
    $region5: #{tpu_custom_call.1} parent=1 // loop_body
      %s26 = ssub.s32 %s21, 1
      %s27 = ssub.s32 %s21, 2
      %s28 = sadd.s32 %s21, 1
      %s29 = ssub.s32 %s21, %s28
      %p30 = scmp.eq.s32.totalorder %s29, 0
      %s32 = sadd.s32 %s31, 1
      %s33 = scalar_select %p30, %s31, %s32
      %p36 = pneg %p30
      %p37 = scmp.eq.s32.totalorder %s21, 1
      %p38 = por %p36, %p37
      %p39 = scmp.ne.s32.totalorder %s31, %s34
      %p40 = scmp.eq.s32.totalorder %s21, 0
      %p41 = por %p39, %p40
      %p42 = scmp.ne.s32.totalorder %s31, %s34
      %p43 = scmp.eq.s32.totalorder %s26, 1
      %p44 = por %p42, %p43
      %p45 = scmp.ne.s32.totalorder %s34, %s35
      %p46 = scmp.eq.s32.totalorder %s26, 0
      %p47 = por %p45, %p46
      %p48 = scmp.ne.s32.totalorder %s34, %s35
      %p49 = scmp.eq.s32.totalorder %s27, 1
      %p50 = por %p48, %p49
      %p52 = scmp.ne.s32.totalorder %s35, %s51
      %p53 = scmp.eq.s32.totalorder %s27, 0
      %p54 = por %p52, %p53
      %s56 = sadd.s32 %s55, 1
      %p59 = scmp.eq.s32.totalorder %s21, 1
      %p60 = scmp.ne.s32.totalorder %s55, %s57
      %p61 = scmp.eq.s32.totalorder %s21, 0
      %p62 = por %p60, %p61
      %p63 = scmp.ne.s32.totalorder %s55, %s57
      %p64 = scmp.eq.s32.totalorder %s26, 1
      %p65 = por %p63, %p64
      %p66 = scmp.ne.s32.totalorder %s57, %s58
      %p67 = scmp.eq.s32.totalorder %s26, 0
      %p68 = por %p66, %p67
      %p69 = scmp.ne.s32.totalorder %s57, %s58
      %p70 = scmp.eq.s32.totalorder %s27, 1
      %p71 = por %p69, %p70
      %p73 = scmp.ne.s32.totalorder %s58, %s72
      %p74 = scmp.eq.s32.totalorder %s27, 0
      %p75 = por %p73, %p74
      %s77 = sadd.s32 %s76, 1
      %p80 = scmp.eq.s32.totalorder %s21, 1
      %p81 = scmp.ne.s32.totalorder %s76, %s78
      %p82 = scmp.eq.s32.totalorder %s21, 0
      %p83 = por %p81, %p82
      %p84 = scmp.ne.s32.totalorder %s76, %s78
      %p85 = scmp.eq.s32.totalorder %s26, 1
      %p86 = por %p84, %p85
      %p87 = scmp.ne.s32.totalorder %s78, %s79
      %p88 = scmp.eq.s32.totalorder %s26, 0
      %p89 = por %p87, %p88
      %p90 = scmp.ne.s32.totalorder %s78, %s79
      %p91 = scmp.eq.s32.totalorder %s27, 1
      %p92 = por %p90, %p91
      %p94 = scmp.ne.s32.totalorder %s79, %s93
      %p95 = scmp.eq.s32.totalorder %s27, 0
      %p96 = por %p94, %p95
      %s98 = sadd.s32 %s97, 1
      %p101 = scmp.eq.s32.totalorder %s21, 1
      %p102 = scmp.ne.s32.totalorder %s97, %s99
      %p103 = scmp.eq.s32.totalorder %s21, 0
      %p104 = por %p102, %p103
      %p105 = scmp.ne.s32.totalorder %s97, %s99
      %p106 = scmp.eq.s32.totalorder %s26, 1
      %p107 = por %p105, %p106
      %p108 = scmp.ne.s32.totalorder %s99, %s100
      %p109 = scmp.eq.s32.totalorder %s26, 0
      %p110 = por %p108, %p109
      %p111 = scmp.ne.s32.totalorder %s99, %s100
      %p112 = scmp.eq.s32.totalorder %s27, 1
      %p113 = por %p111, %p112
      %p115 = scmp.ne.s32.totalorder %s100, %s114
      %p116 = scmp.eq.s32.totalorder %s27, 0
      %p117 = por %p115, %p116
      %s119 = sadd.s32 %s118, 1
      %p122 = scmp.eq.s32.totalorder %s21, 1
      %p123 = scmp.ne.s32.totalorder %s118, %s120
      %p124 = scmp.eq.s32.totalorder %s21, 0
      %p125 = por %p123, %p124
      %p126 = scmp.ne.s32.totalorder %s118, %s120
      %p127 = scmp.eq.s32.totalorder %s26, 1
      %p128 = por %p126, %p127
      %p129 = scmp.ne.s32.totalorder %s120, %s121
      %p130 = scmp.eq.s32.totalorder %s26, 0
      %p131 = por %p129, %p130
      %p132 = scmp.ne.s32.totalorder %s120, %s121
      %p133 = scmp.eq.s32.totalorder %s27, 1
      %p134 = por %p132, %p133
      %p136 = scmp.ne.s32.totalorder %s121, %s135
      %p137 = scmp.eq.s32.totalorder %s27, 0
      %p138 = por %p136, %p137
      %s140 = sadd.s32 %s139, 1
      %p143 = scmp.eq.s32.totalorder %s21, 1
      %p144 = scmp.ne.s32.totalorder %s139, %s141
      %p145 = scmp.eq.s32.totalorder %s21, 0
      %p146 = por %p144, %p145
      %p147 = scmp.ne.s32.totalorder %s139, %s141
      %p148 = scmp.eq.s32.totalorder %s26, 1
      %p149 = por %p147, %p148
      %p150 = scmp.ne.s32.totalorder %s141, %s142
      %p151 = scmp.eq.s32.totalorder %s26, 0
      %p152 = por %p150, %p151
      %p153 = scmp.ne.s32.totalorder %s141, %s142
      %p154 = scmp.eq.s32.totalorder %s27, 1
      %p155 = por %p153, %p154
      %p157 = scmp.ne.s32.totalorder %s142, %s156
      %p158 = scmp.eq.s32.totalorder %s27, 0
      %p159 = por %p157, %p158
      %s161 = sadd.s32 %s160, 1
      %p164 = scmp.eq.s32.totalorder %s21, 1
      %p165 = scmp.ne.s32.totalorder %s160, %s162
      %p166 = scmp.eq.s32.totalorder %s21, 0
      %p167 = por %p165, %p166
      %p168 = scmp.ne.s32.totalorder %s160, %s162
      %p169 = scmp.eq.s32.totalorder %s26, 1
      %p170 = por %p168, %p169
      %p171 = scmp.ne.s32.totalorder %s162, %s163
      %p172 = scmp.eq.s32.totalorder %s26, 0
      %p173 = por %p171, %p172
      %p174 = scmp.ne.s32.totalorder %s162, %s163
      %p175 = scmp.eq.s32.totalorder %s27, 1
      %p176 = por %p174, %p175
      %p178 = scmp.ne.s32.totalorder %s163, %s177
      %p179 = scmp.eq.s32.totalorder %s27, 0
      %p180 = por %p178, %p179
      %s181 = ssub.s32 %s21, %s28
      %p182 = scmp.eq.s32.totalorder %s181, 0
      %s184 = sadd.s32 %s183, 1
      %s185 = scalar_select %p182, %s183, %s184
      %p188 = pneg %p182
      %p189 = scmp.eq.s32.totalorder %s21, 1
      %p190 = por %p188, %p189
      %p191 = scmp.ne.s32.totalorder %s183, %s186
      %p192 = scmp.eq.s32.totalorder %s21, 0
      %p193 = por %p191, %p192
      %p194 = scmp.ne.s32.totalorder %s183, %s186
      %p195 = scmp.eq.s32.totalorder %s26, 1
      %p196 = por %p194, %p195
      %p197 = scmp.ne.s32.totalorder %s186, %s187
      %p198 = scmp.eq.s32.totalorder %s26, 0
      %p199 = por %p197, %p198
      %p200 = scmp.ne.s32.totalorder %s186, %s187
      %p201 = scmp.eq.s32.totalorder %s27, 1
      %p202 = por %p200, %p201
      %p204 = scmp.ne.s32.totalorder %s187, %s203
      %p205 = scmp.eq.s32.totalorder %s27, 0
      %p206 = por %p204, %p205
      %p207 = scmp.le.s32.totalorder 1, %s21
      %p208 = scmp.lt.s32.totalorder %s21, 3
      %p209 = pnand %p207, %p208
      %p210 = pneg %p209
      // Predicated region
      $region9: #{tpu_custom_call.1} parent=5 // pred_check
        _
      $region10: #{tpu_custom_call.1} parent=5 // pred_check_branch
        %212 = sbr.rel (%p209) target = $region12
      $region11: #{tpu_custom_call.1} parent=5 // pred_region
        %s213 = ssub.s32 %s21, 1
        // Predicated region
        $region13: #{tpu_custom_call.1} parent=11 // pred_check
          %p214 = pneg %p68
        $region14: #{tpu_custom_call.1} parent=11 // pred_check_branch
          %216 = sbr.rel (%p214) target = $region16
        $region15: #{tpu_custom_call.1} parent=11 // pred_region
          %s218 = ssub.s32 24576, 24576
          %219 = vsyncadd [#allocation6], %s218
          %s220 = sshll.u32 [#allocation5], 4
          %s221 = int_to_ptr.vmem [resolvable:$true] %s220
          %226 = dma.hbm_to_vmem [thread:$0]  %s1, 24576, %s221, [#allocation6], 256, 256, 16
        $region16: #{tpu_custom_call.1} parent=11 // pred_fallthru
          _
        // Predicated region
        $region17: #{tpu_custom_call.1} parent=11 // pred_check
          %p227 = pneg %p89
        $region18: #{tpu_custom_call.1} parent=11 // pred_check_branch
          %229 = sbr.rel (%p227) target = $region20
        $region19: #{tpu_custom_call.1} parent=11 // pred_region
          _
        $region20: #{tpu_custom_call.1} parent=11 // pred_fallthru
          _
        // Predicated region
        $region21: #{tpu_custom_call.1} parent=11 // pred_check
          %p230 = pneg %p110
        $region22: #{tpu_custom_call.1} parent=11 // pred_check_branch
          %232 = sbr.rel (%p230) target = $region24
        $region23: #{tpu_custom_call.1} parent=11 // pred_region
          %s234 = ssub.s32 8192, 8192
          %235 = vsyncadd [#allocation6], %s234
          %s236 = sshll.u32 [#allocation7], 4
          %s237 = int_to_ptr.vmem [resolvable:$true] %s236
          %242 = dma.hbm_to_vmem [thread:$0]  %s3, 8192, %s237, [#allocation6], 256, 256, 16
        $region24: #{tpu_custom_call.1} parent=11 // pred_fallthru
          _
        // Predicated region
        $region25: #{tpu_custom_call.1} parent=11 // pred_check
          %p243 = pneg %p131
        $region26: #{tpu_custom_call.1} parent=11 // pred_check_branch
          %245 = sbr.rel (%p243) target = $region28
        $region27: #{tpu_custom_call.1} parent=11 // pred_region
          _
        $region28: #{tpu_custom_call.1} parent=11 // pred_fallthru
          _
        // Predicated region
        $region29: #{tpu_custom_call.1} parent=11 // pred_check
          %p246 = pneg %p152
        $region30: #{tpu_custom_call.1} parent=11 // pred_check_branch
          %248 = sbr.rel (%p246) target = $region32
        $region31: #{tpu_custom_call.1} parent=11 // pred_region
          %s250 = ssub.s32 4096, 4096
          %251 = vsyncadd [#allocation9], %s250
          %s252 = sshll.u32 [#allocation8], 4
          %s253 = int_to_ptr.vmem [resolvable:$true] %s252
          %258 = dma.hbm_to_vmem [thread:$0]  %s5, 4096, %s253, [#allocation9], 128, 128, 8
        $region32: #{tpu_custom_call.1} parent=11 // pred_fallthru
          _
        // Predicated region
        $region33: #{tpu_custom_call.1} parent=11 // pred_check
          %p259 = pneg %p173
        $region34: #{tpu_custom_call.1} parent=11 // pred_check_branch
          %261 = sbr.rel (%p259) target = $region36
        $region35: #{tpu_custom_call.1} parent=11 // pred_region
          _
        $region36: #{tpu_custom_call.1} parent=11 // pred_fallthru
          _
      $region12: #{tpu_custom_call.1} parent=5 // pred_fallthru
        _
      %p262 = scmp.lt.s32.totalorder %s21, 2
      // Predicated region
      $region37: #{tpu_custom_call.1} parent=5 // pred_check
        %p263 = pneg %p262
      $region38: #{tpu_custom_call.1} parent=5 // pred_check_branch
        %265 = sbr.rel (%p263) target = $region40
      $region39: #{tpu_custom_call.1} parent=5 // pred_region
        // Predicated region
        $region41: #{tpu_custom_call.1} parent=39 // pred_check
          %p266 = pneg %p41
        $region42: #{tpu_custom_call.1} parent=39 // pred_check_branch
          %268 = sbr.rel (%p266) target = $region44
        $region43: #{tpu_custom_call.1} parent=39 // pred_region
          %s269 = sand.u32 %s31, 1
          %s270 = scalar_lea.sflag [#allocation3], %s269
          %s271 = sand.u32 %s31, 1
          %s272 = smul.addr %s271, 48
          %s273 = scalar_lea.vmem [#allocation2], %s272
          %s275 = ssub.s32 768, 768
          %276 = vsyncadd %s270, %s275
          %s277 = smul.addr %s21, 6
          %s278 = smul.addr %s277, 128
          %s279 = scalar_lea.hbm %s0, %s278
          %s281 = sshll.u32 %s273, 4
          %s282 = int_to_ptr.vmem [resolvable:$true] %s281
          %284 = dma.hbm_to_vmem [thread:$0]  %s279, 768, %s282, %s270
        $region44: #{tpu_custom_call.1} parent=39 // pred_fallthru
          _
      $region40: #{tpu_custom_call.1} parent=5 // pred_fallthru
        _
      %p285 = scmp.le.s32.totalorder 1, %s21
      %p286 = scmp.lt.s32.totalorder %s21, 3
      %p287 = pnand %p285, %p286
      %p288 = pneg %p287
      // Predicated region
      $region45: #{tpu_custom_call.1} parent=5 // pred_check
        _
      $region46: #{tpu_custom_call.1} parent=5 // pred_check_branch
        %290 = sbr.rel (%p287) target = $region48
      $region47: #{tpu_custom_call.1} parent=5 // pred_region
        %s291 = ssub.s32 %s21, 1
        %s292 = sand.u32 %s34, 1
        %s293 = scalar_lea.sflag [#allocation3], %s292
        %s294 = sand.u32 %s34, 1
        %s295 = smul.addr %s294, 48
        %s296 = scalar_lea.vmem [#allocation2], %s295
        // Predicated region
        $region49: #{tpu_custom_call.1} parent=47 // pred_check
          %p297 = pneg %p47
        $region50: #{tpu_custom_call.1} parent=47 // pred_check_branch
          %299 = sbr.rel (%p297) target = $region52
        $region51: #{tpu_custom_call.1} parent=47 // pred_region
          %300 = dma.done %s293, 768
        $region52: #{tpu_custom_call.1} parent=47 // pred_fallthru
          _
        // Predicated region
        $region53: #{tpu_custom_call.1} parent=47 // pred_check
          %p301 = pneg %p68
        $region54: #{tpu_custom_call.1} parent=47 // pred_check_branch
          %303 = sbr.rel (%p301) target = $region56
        $region55: #{tpu_custom_call.1} parent=47 // pred_region
          %304 = dma.done [#allocation6], 24576
        $region56: #{tpu_custom_call.1} parent=47 // pred_fallthru
          _
        // Predicated region
        $region57: #{tpu_custom_call.1} parent=47 // pred_check
          %p305 = pneg %p110
        $region58: #{tpu_custom_call.1} parent=47 // pred_check_branch
          %307 = sbr.rel (%p305) target = $region60
        $region59: #{tpu_custom_call.1} parent=47 // pred_region
          %308 = dma.done [#allocation6], 8192
        $region60: #{tpu_custom_call.1} parent=47 // pred_fallthru
          _
        // Predicated region
        $region61: #{tpu_custom_call.1} parent=47 // pred_check
          %p309 = pneg %p152
        $region62: #{tpu_custom_call.1} parent=47 // pred_check_branch
          %311 = sbr.rel (%p309) target = $region64
        $region63: #{tpu_custom_call.1} parent=47 // pred_region
          %312 = dma.done [#allocation9], 4096
        $region64: #{tpu_custom_call.1} parent=47 // pred_fallthru
          _
        %s313 = sand.u32 %s34, 1
        %s314 = scalar_lea.sflag [#allocation3], %s313
        %s315 = sand.u32 %s34, 1
        %s316 = smul.addr %s315, 48
        %s317 = scalar_lea.vmem [#allocation2], %s316
        %p318 = pneg %p47
        %p319 = pneg %p44
        %p320 = pneg %p68
        %p321 = pneg %p65
        %p322 = pneg %p89
        %p323 = pneg %p86
        %p324 = pneg %p110
        %p325 = pneg %p107
        %p326 = pneg %p131
        %p327 = pneg %p128
        %p328 = pneg %p152
        %p329 = pneg %p149
        %p330 = pneg %p173
        %p331 = pneg %p170
        %p332 = pneg %p199
        %p333 = pneg %p196
        %s334 = sand.u32 %s186, 1
        %s335 = scalar_lea.sflag [#allocation4], %s334
        %s336 = sand.u32 %s186, 1
        %s337 = smul.addr %s336, 8
        %s338 = scalar_lea.vmem [#allocation10], %s337
        %v339 = vld [vmem:[%s296] sm:$0xff]
        %v340 = vld [vmem:[%s296 + $0x8] sm:$0xff]
        %v341 = vld [vmem:[%s296 + $0x10] sm:$0xff]
        %v342 = vld [vmem:[%s296 + $0x18] sm:$0xff]
        %v343 = vld [vmem:[%s296 + $0x20] sm:$0xff]
        %v344 = vld [vmem:[%s296 + $0x28] sm:$0xff]
        %v345 = vld [vmem:[#allocation5] sm:$0xff]
        %v346 = vld [vmem:[#allocation5 + $0x8] sm:$0xff]
        %v347 = vld [vmem:[#allocation5 + $0x10] sm:$0xff]
        %v348 = vld [vmem:[#allocation5 + $0x18] sm:$0xff]
        %v349 = vld [vmem:[#allocation5 + $0x20] sm:$0xff]
        %v350 = vld [vmem:[#allocation5 + $0x28] sm:$0xff]
        %v351 = vld [vmem:[#allocation5 + $0x30] sm:$0xff]
        %v352 = vld [vmem:[#allocation5 + $0x38] sm:$0xff]
        %v353 = vld [vmem:[#allocation5 + $0x40] sm:$0xff]
        %v354 = vld [vmem:[#allocation5 + $0x48] sm:$0xff]
        %v355 = vld [vmem:[#allocation5 + $0x50] sm:$0xff]
        %v356 = vld [vmem:[#allocation5 + $0x58] sm:$0xff]
        %v357 = vld [vmem:[#allocation5 + $0x60] sm:$0xff]
        %v358 = vld [vmem:[#allocation5 + $0x68] sm:$0xff]
        %v359 = vld [vmem:[#allocation5 + $0x70] sm:$0xff]
        %v360 = vld [vmem:[#allocation5 + $0x78] sm:$0xff]
        %v361 = vld [vmem:[#allocation5 + $0x80] sm:$0xff]
        %v362 = vld [vmem:[#allocation5 + $0x88] sm:$0xff]
        %v363 = vld [vmem:[#allocation5 + $0x90] sm:$0xff]
        %v364 = vld [vmem:[#allocation5 + $0x98] sm:$0xff]
        %v365 = vld [vmem:[#allocation5 + $0xa0] sm:$0xff]
        %v366 = vld [vmem:[#allocation5 + $0xa8] sm:$0xff]
        %v367 = vld [vmem:[#allocation5 + $0xb0] sm:$0xff]
        %v368 = vld [vmem:[#allocation5 + $0xb8] sm:$0xff]
        %v369 = vld [vmem:[#allocation5 + $0xc0] sm:$0xff]
        %v370 = vld [vmem:[#allocation5 + $0xc8] sm:$0xff]
        %v371 = vld [vmem:[#allocation5 + $0xd0] sm:$0xff]
        %v372 = vld [vmem:[#allocation5 + $0xd8] sm:$0xff]
        %v373 = vld [vmem:[#allocation5 + $0xe0] sm:$0xff]
        %v374 = vld [vmem:[#allocation5 + $0xe8] sm:$0xff]
        %v375 = vld [vmem:[#allocation5 + $0xf0] sm:$0xff]
        %v376 = vld [vmem:[#allocation5 + $0xf8] sm:$0xff]
        %v377 = vld [vmem:[#allocation5 + $0x100] sm:$0xff]
        %v378 = vld [vmem:[#allocation5 + $0x108] sm:$0xff]
        %v379 = vld [vmem:[#allocation5 + $0x110] sm:$0xff]
        %v380 = vld [vmem:[#allocation5 + $0x118] sm:$0xff]
        %v381 = vld [vmem:[#allocation5 + $0x120] sm:$0xff]
        %v382 = vld [vmem:[#allocation5 + $0x128] sm:$0xff]
        %v383 = vld [vmem:[#allocation5 + $0x130] sm:$0xff]
        %v384 = vld [vmem:[#allocation5 + $0x138] sm:$0xff]
        %v385 = vld [vmem:[#allocation5 + $0x140] sm:$0xff]
        %v386 = vld [vmem:[#allocation5 + $0x148] sm:$0xff]
        %v387 = vld [vmem:[#allocation5 + $0x150] sm:$0xff]
        %v388 = vld [vmem:[#allocation5 + $0x158] sm:$0xff]
        %v389 = vld [vmem:[#allocation5 + $0x160] sm:$0xff]
        %v390 = vld [vmem:[#allocation5 + $0x168] sm:$0xff]
        %v391 = vld [vmem:[#allocation5 + $0x170] sm:$0xff]
        %v392 = vld [vmem:[#allocation5 + $0x178] sm:$0xff]
        %v393 = vld [vmem:[#allocation5 + $0x180] sm:$0xff]
        %v394 = vld [vmem:[#allocation5 + $0x188] sm:$0xff]
        %v395 = vld [vmem:[#allocation5 + $0x190] sm:$0xff]
        %v396 = vld [vmem:[#allocation5 + $0x198] sm:$0xff]
        %v397 = vld [vmem:[#allocation5 + $0x1a0] sm:$0xff]
        %v398 = vld [vmem:[#allocation5 + $0x1a8] sm:$0xff]
        %v399 = vld [vmem:[#allocation5 + $0x1b0] sm:$0xff]
        %v400 = vld [vmem:[#allocation5 + $0x1b8] sm:$0xff]
        %v401 = vld [vmem:[#allocation5 + $0x1c0] sm:$0xff]
        %v402 = vld [vmem:[#allocation5 + $0x1c8] sm:$0xff]
        %v403 = vld [vmem:[#allocation5 + $0x1d0] sm:$0xff]
        %v404 = vld [vmem:[#allocation5 + $0x1d8] sm:$0xff]
        %v405 = vld [vmem:[#allocation5 + $0x1e0] sm:$0xff]
        %v406 = vld [vmem:[#allocation5 + $0x1e8] sm:$0xff]
        %v407 = vld [vmem:[#allocation5 + $0x1f0] sm:$0xff]
        %v408 = vld [vmem:[#allocation5 + $0x1f8] sm:$0xff]
        %v409 = vld [vmem:[#allocation5 + $0x200] sm:$0xff]
        %v410 = vld [vmem:[#allocation5 + $0x208] sm:$0xff]
        %v411 = vld [vmem:[#allocation5 + $0x210] sm:$0xff]
        %v412 = vld [vmem:[#allocation5 + $0x218] sm:$0xff]
        %v413 = vld [vmem:[#allocation5 + $0x220] sm:$0xff]
        %v414 = vld [vmem:[#allocation5 + $0x228] sm:$0xff]
        %v415 = vld [vmem:[#allocation5 + $0x230] sm:$0xff]
        %v416 = vld [vmem:[#allocation5 + $0x238] sm:$0xff]
        %v417 = vld [vmem:[#allocation5 + $0x240] sm:$0xff]
        %v418 = vld [vmem:[#allocation5 + $0x248] sm:$0xff]
        %v419 = vld [vmem:[#allocation5 + $0x250] sm:$0xff]
        %v420 = vld [vmem:[#allocation5 + $0x258] sm:$0xff]
        %v421 = vld [vmem:[#allocation5 + $0x260] sm:$0xff]
        %v422 = vld [vmem:[#allocation5 + $0x268] sm:$0xff]
        %v423 = vld [vmem:[#allocation5 + $0x270] sm:$0xff]
        %v424 = vld [vmem:[#allocation5 + $0x278] sm:$0xff]
        %v425 = vld [vmem:[#allocation5 + $0x280] sm:$0xff]
        %v426 = vld [vmem:[#allocation5 + $0x288] sm:$0xff]
        %v427 = vld [vmem:[#allocation5 + $0x290] sm:$0xff]
        %v428 = vld [vmem:[#allocation5 + $0x298] sm:$0xff]
        %v429 = vld [vmem:[#allocation5 + $0x2a0] sm:$0xff]
        %v430 = vld [vmem:[#allocation5 + $0x2a8] sm:$0xff]
        %v431 = vld [vmem:[#allocation5 + $0x2b0] sm:$0xff]
        %v432 = vld [vmem:[#allocation5 + $0x2b8] sm:$0xff]
        %v433 = vld [vmem:[#allocation5 + $0x2c0] sm:$0xff]
        %v434 = vld [vmem:[#allocation5 + $0x2c8] sm:$0xff]
        %v435 = vld [vmem:[#allocation5 + $0x2d0] sm:$0xff]
        %v436 = vld [vmem:[#allocation5 + $0x2d8] sm:$0xff]
        %v437 = vld [vmem:[#allocation5 + $0x2e0] sm:$0xff]
        %v438 = vld [vmem:[#allocation5 + $0x2e8] sm:$0xff]
        %v439 = vld [vmem:[#allocation5 + $0x2f0] sm:$0xff]
        %v440 = vld [vmem:[#allocation5 + $0x2f8] sm:$0xff]
        %v441 = vld [vmem:[#allocation5 + $0x300] sm:$0xff]
        %v442 = vld [vmem:[#allocation5 + $0x308] sm:$0xff]
        %v443 = vld [vmem:[#allocation5 + $0x310] sm:$0xff]
        %v444 = vld [vmem:[#allocation5 + $0x318] sm:$0xff]
        %v445 = vld [vmem:[#allocation5 + $0x320] sm:$0xff]
        %v446 = vld [vmem:[#allocation5 + $0x328] sm:$0xff]
        %v447 = vld [vmem:[#allocation5 + $0x330] sm:$0xff]
        %v448 = vld [vmem:[#allocation5 + $0x338] sm:$0xff]
        %v449 = vld [vmem:[#allocation5 + $0x340] sm:$0xff]
        %v450 = vld [vmem:[#allocation5 + $0x348] sm:$0xff]
        %v451 = vld [vmem:[#allocation5 + $0x350] sm:$0xff]
        %v452 = vld [vmem:[#allocation5 + $0x358] sm:$0xff]
        %v453 = vld [vmem:[#allocation5 + $0x360] sm:$0xff]
        %v454 = vld [vmem:[#allocation5 + $0x368] sm:$0xff]
        %v455 = vld [vmem:[#allocation5 + $0x370] sm:$0xff]
        %v456 = vld [vmem:[#allocation5 + $0x378] sm:$0xff]
        %v457 = vld [vmem:[#allocation5 + $0x380] sm:$0xff]
        %v458 = vld [vmem:[#allocation5 + $0x388] sm:$0xff]
        %v459 = vld [vmem:[#allocation5 + $0x390] sm:$0xff]
        %v460 = vld [vmem:[#allocation5 + $0x398] sm:$0xff]
        %v461 = vld [vmem:[#allocation5 + $0x3a0] sm:$0xff]
        %v462 = vld [vmem:[#allocation5 + $0x3a8] sm:$0xff]
        %v463 = vld [vmem:[#allocation5 + $0x3b0] sm:$0xff]
        %v464 = vld [vmem:[#allocation5 + $0x3b8] sm:$0xff]
        %v465 = vld [vmem:[#allocation5 + $0x3c0] sm:$0xff]
        %v466 = vld [vmem:[#allocation5 + $0x3c8] sm:$0xff]
        %v467 = vld [vmem:[#allocation5 + $0x3d0] sm:$0xff]
        %v468 = vld [vmem:[#allocation5 + $0x3d8] sm:$0xff]
        %v469 = vld [vmem:[#allocation5 + $0x3e0] sm:$0xff]
        %v470 = vld [vmem:[#allocation5 + $0x3e8] sm:$0xff]
        %v471 = vld [vmem:[#allocation5 + $0x3f0] sm:$0xff]
        %v472 = vld [vmem:[#allocation5 + $0x3f8] sm:$0xff]
        %v473 = vld [vmem:[#allocation5 + $0x400] sm:$0xff]
        %v474 = vld [vmem:[#allocation5 + $0x408] sm:$0xff]
        %v475 = vld [vmem:[#allocation5 + $0x410] sm:$0xff]
        %v476 = vld [vmem:[#allocation5 + $0x418] sm:$0xff]
        %v477 = vld [vmem:[#allocation5 + $0x420] sm:$0xff]
        %v478 = vld [vmem:[#allocation5 + $0x428] sm:$0xff]
        %v479 = vld [vmem:[#allocation5 + $0x430] sm:$0xff]
        %v480 = vld [vmem:[#allocation5 + $0x438] sm:$0xff]
        %v481 = vld [vmem:[#allocation5 + $0x440] sm:$0xff]
        %v482 = vld [vmem:[#allocation5 + $0x448] sm:$0xff]
        %v483 = vld [vmem:[#allocation5 + $0x450] sm:$0xff]
        %v484 = vld [vmem:[#allocation5 + $0x458] sm:$0xff]
        %v485 = vld [vmem:[#allocation5 + $0x460] sm:$0xff]
        %v486 = vld [vmem:[#allocation5 + $0x468] sm:$0xff]
        %v487 = vld [vmem:[#allocation5 + $0x470] sm:$0xff]
        %v488 = vld [vmem:[#allocation5 + $0x478] sm:$0xff]
        %v489 = vld [vmem:[#allocation5 + $0x480] sm:$0xff]
        %v490 = vld [vmem:[#allocation5 + $0x488] sm:$0xff]
        %v491 = vld [vmem:[#allocation5 + $0x490] sm:$0xff]
        %v492 = vld [vmem:[#allocation5 + $0x498] sm:$0xff]
        %v493 = vld [vmem:[#allocation5 + $0x4a0] sm:$0xff]
        %v494 = vld [vmem:[#allocation5 + $0x4a8] sm:$0xff]
        %v495 = vld [vmem:[#allocation5 + $0x4b0] sm:$0xff]
        %v496 = vld [vmem:[#allocation5 + $0x4b8] sm:$0xff]
        %v497 = vld [vmem:[#allocation5 + $0x4c0] sm:$0xff]
        %v498 = vld [vmem:[#allocation5 + $0x4c8] sm:$0xff]
        %v499 = vld [vmem:[#allocation5 + $0x4d0] sm:$0xff]
        %v500 = vld [vmem:[#allocation5 + $0x4d8] sm:$0xff]
        %v501 = vld [vmem:[#allocation5 + $0x4e0] sm:$0xff]
        %v502 = vld [vmem:[#allocation5 + $0x4e8] sm:$0xff]
        %v503 = vld [vmem:[#allocation5 + $0x4f0] sm:$0xff]
        %v504 = vld [vmem:[#allocation5 + $0x4f8] sm:$0xff]
        %v505 = vld [vmem:[#allocation5 + $0x500] sm:$0xff]
        %v506 = vld [vmem:[#allocation5 + $0x508] sm:$0xff]
        %v507 = vld [vmem:[#allocation5 + $0x510] sm:$0xff]
        %v508 = vld [vmem:[#allocation5 + $0x518] sm:$0xff]
        %v509 = vld [vmem:[#allocation5 + $0x520] sm:$0xff]
        %v510 = vld [vmem:[#allocation5 + $0x528] sm:$0xff]
        %v511 = vld [vmem:[#allocation5 + $0x530] sm:$0xff]
        %v512 = vld [vmem:[#allocation5 + $0x538] sm:$0xff]
        %v513 = vld [vmem:[#allocation5 + $0x540] sm:$0xff]
        %v514 = vld [vmem:[#allocation5 + $0x548] sm:$0xff]
        %v515 = vld [vmem:[#allocation5 + $0x550] sm:$0xff]
        %v516 = vld [vmem:[#allocation5 + $0x558] sm:$0xff]
        %v517 = vld [vmem:[#allocation5 + $0x560] sm:$0xff]
        %v518 = vld [vmem:[#allocation5 + $0x568] sm:$0xff]
        %v519 = vld [vmem:[#allocation5 + $0x570] sm:$0xff]
        %v520 = vld [vmem:[#allocation5 + $0x578] sm:$0xff]
        %v521 = vld [vmem:[#allocation5 + $0x580] sm:$0xff]
        %v522 = vld [vmem:[#allocation5 + $0x588] sm:$0xff]
        %v523 = vld [vmem:[#allocation5 + $0x590] sm:$0xff]
        %v524 = vld [vmem:[#allocation5 + $0x598] sm:$0xff]
        %v525 = vld [vmem:[#allocation5 + $0x5a0] sm:$0xff]
        %v526 = vld [vmem:[#allocation5 + $0x5a8] sm:$0xff]
        %v527 = vld [vmem:[#allocation5 + $0x5b0] sm:$0xff]
        %v528 = vld [vmem:[#allocation5 + $0x5b8] sm:$0xff]
        %v529 = vld [vmem:[#allocation5 + $0x5c0] sm:$0xff]
        %v530 = vld [vmem:[#allocation5 + $0x5c8] sm:$0xff]
        %v531 = vld [vmem:[#allocation5 + $0x5d0] sm:$0xff]
        %v532 = vld [vmem:[#allocation5 + $0x5d8] sm:$0xff]
        %v533 = vld [vmem:[#allocation5 + $0x5e0] sm:$0xff]
        %v534 = vld [vmem:[#allocation5 + $0x5e8] sm:$0xff]
        %v535 = vld [vmem:[#allocation5 + $0x5f0] sm:$0xff]
        %v536 = vld [vmem:[#allocation5 + $0x5f8] sm:$0xff]
        %v537 = vld [vmem:[%s2] sm:$0x3]
        %v539 = vlaneseq
        %v540 = vshrl.u32 %v539, 7
        %v541 = vsub.s32 0, %v540
        %v542 = vrot.slane %v537, %v541
        %v543 = vlaneseq
        %v544 = vshrl.u32 %v543, 7
        %v545 = vsub.s32 1, %v544
        %v546 = vrot.slane %v537, %v545
        %549 = vmatprep.subr.mxu0 %v346
        %550 = vmatpush1.msra.mxu0 %v345
        %551 = vmatprep.subr.mxu0 %v348
        %552 = vmatpush1.msra.mxu0 %v347
        %553 = vmatprep.subr.mxu0 %v350
        %554 = vmatpush1.msra.mxu0 %v349
        %555 = vmatprep.subr.mxu0 %v352
        %556 = vmatpush1.msra.mxu0 %v351
        %557 = vmatprep.subr.mxu0 %v354
        %558 = vmatpush1.msra.mxu0 %v353
        %559 = vmatprep.subr.mxu0 %v356
        %560 = vmatpush1.msra.mxu0 %v355
        %561 = vmatprep.subr.mxu0 %v358
        %562 = vmatpush1.msra.mxu0 %v357
        %563 = vmatprep.subr.mxu0 %v360
        %564 = vmatpush1.msra.mxu0 %v359
        %565 = vmatprep.subr.mxu0 %v362
        %566 = vmatpush1.msra.mxu0 %v361
        %567 = vmatprep.subr.mxu0 %v364
        %568 = vmatpush1.msra.mxu0 %v363
        %569 = vmatprep.subr.mxu0 %v366
        %570 = vmatpush1.msra.mxu0 %v365
        %571 = vmatprep.subr.mxu0 %v368
        %572 = vmatpush1.msra.mxu0 %v367
        %573 = vmatprep.subr.mxu0 %v370
        %574 = vmatpush1.msra.mxu0 %v369
        %575 = vmatprep.subr.mxu0 %v372
        %576 = vmatpush1.msra.mxu0 %v371
        %577 = vmatprep.subr.mxu0 %v374
        %578 = vmatpush1.msra.mxu0 %v373
        %579 = vmatprep.subr.mxu0 %v376
        %580 = vmatpush1.msra.mxu0 %v375
        %581 = vmatprep.subr.mxu0 %v378
        %582 = vmatpush1.msra.mxu0 %v377
        %583 = vmatprep.subr.mxu0 %v380
        %584 = vmatpush1.msra.mxu0 %v379
        %585 = vmatprep.subr.mxu0 %v382
        %586 = vmatpush1.msra.mxu0 %v381
        %587 = vmatprep.subr.mxu0 %v384
        %588 = vmatpush1.msra.mxu0 %v383
        %589 = vmatprep.subr.mxu0 %v386
        %590 = vmatpush1.msra.mxu0 %v385
        %591 = vmatprep.subr.mxu0 %v388
        %592 = vmatpush1.msra.mxu0 %v387
        %593 = vmatprep.subr.mxu0 %v390
        %594 = vmatpush1.msra.mxu0 %v389
        %595 = vmatprep.subr.mxu0 %v392
        %596 = vmatpush1.msra.mxu0 %v391
        %597 = vmatprep.subr.mxu0 %v394
        %598 = vmatpush1.msra.mxu0 %v393
        %599 = vmatprep.subr.mxu0 %v396
        %600 = vmatpush1.msra.mxu0 %v395
        %601 = vmatprep.subr.mxu0 %v398
        %602 = vmatpush1.msra.mxu0 %v397
        %603 = vmatprep.subr.mxu0 %v400
        %604 = vmatpush1.msra.mxu0 %v399
        %605 = vmatprep.subr.mxu0 %v402
        %606 = vmatpush1.msra.mxu0 %v401
        %607 = vmatprep.subr.mxu0 %v404
        %608 = vmatpush1.msra.mxu0 %v403
        %609 = vmatprep.subr.mxu0 %v406
        %610 = vmatpush1.msra.mxu0 %v405
        %611 = vmatprep.subr.mxu0 %v408
        %612 = vmatpush1.msra.mxu0 %v407
        %613 = vmatprep.mubr.f32.mxu0 %v340
        %614 = vmatmul.mubr.f32.gmra.mrb[0].mxu0 %v339
        %v615 = vpop.f32.mrb[0].mxu0
        %v616 = vadd.f32 %v542, %v615
        %v617 = vpop.f32.mrb[0].mxu0
        %v618 = vadd.f32 %v546, %v617
        %619 = vdwg.mxu0
        %620 = vmatprep.subr.mxu0 %v410
        %621 = vmatpush1.msra.mxu0 %v409
        %622 = vmatprep.subr.mxu0 %v412
        %623 = vmatpush1.msra.mxu0 %v411
        %624 = vmatprep.subr.mxu0 %v414
        %625 = vmatpush1.msra.mxu0 %v413
        %626 = vmatprep.subr.mxu0 %v416
        %627 = vmatpush1.msra.mxu0 %v415
        %628 = vmatprep.subr.mxu0 %v418
        %629 = vmatpush1.msra.mxu0 %v417
        %630 = vmatprep.subr.mxu0 %v420
        %631 = vmatpush1.msra.mxu0 %v419
        %632 = vmatprep.subr.mxu0 %v422
        %633 = vmatpush1.msra.mxu0 %v421
        %634 = vmatprep.subr.mxu0 %v424
        %635 = vmatpush1.msra.mxu0 %v423
        %636 = vmatprep.subr.mxu0 %v426
        %637 = vmatpush1.msra.mxu0 %v425
        %638 = vmatprep.subr.mxu0 %v428
        %639 = vmatpush1.msra.mxu0 %v427
        %640 = vmatprep.subr.mxu0 %v430
        %641 = vmatpush1.msra.mxu0 %v429
        %642 = vmatprep.subr.mxu0 %v432
        %643 = vmatpush1.msra.mxu0 %v431
        %644 = vmatprep.subr.mxu0 %v434
        %645 = vmatpush1.msra.mxu0 %v433
        %646 = vmatprep.subr.mxu0 %v436
        %647 = vmatpush1.msra.mxu0 %v435
        %648 = vmatprep.subr.mxu0 %v438
        %649 = vmatpush1.msra.mxu0 %v437
        %650 = vmatprep.subr.mxu0 %v440
        %651 = vmatpush1.msra.mxu0 %v439
        %652 = vmatprep.subr.mxu0 %v442
        %653 = vmatpush1.msra.mxu0 %v441
        %654 = vmatprep.subr.mxu0 %v444
        %655 = vmatpush1.msra.mxu0 %v443
        %656 = vmatprep.subr.mxu0 %v446
        %657 = vmatpush1.msra.mxu0 %v445
        %658 = vmatprep.subr.mxu0 %v448
        %659 = vmatpush1.msra.mxu0 %v447
        %660 = vmatprep.subr.mxu0 %v450
        %661 = vmatpush1.msra.mxu0 %v449
        %662 = vmatprep.subr.mxu0 %v452
        %663 = vmatpush1.msra.mxu0 %v451
        %664 = vmatprep.subr.mxu0 %v454
        %665 = vmatpush1.msra.mxu0 %v453
        %666 = vmatprep.subr.mxu0 %v456
        %667 = vmatpush1.msra.mxu0 %v455
        %668 = vmatprep.subr.mxu0 %v458
        %669 = vmatpush1.msra.mxu0 %v457
        %670 = vmatprep.subr.mxu0 %v460
        %671 = vmatpush1.msra.mxu0 %v459
        %672 = vmatprep.subr.mxu0 %v462
        %673 = vmatpush1.msra.mxu0 %v461
        %674 = vmatprep.subr.mxu0 %v464
        %675 = vmatpush1.msra.mxu0 %v463
        %676 = vmatprep.subr.mxu0 %v466
        %677 = vmatpush1.msra.mxu0 %v465
        %678 = vmatprep.subr.mxu0 %v468
        %679 = vmatpush1.msra.mxu0 %v467
        %680 = vmatprep.subr.mxu0 %v470
        %681 = vmatpush1.msra.mxu0 %v469
        %682 = vmatprep.subr.mxu0 %v472
        %683 = vmatpush1.msra.mxu0 %v471
        %684 = vmatprep.mubr.f32.mxu0 %v342
        %685 = vmatmul.mubr.f32.gmra.mrb[0].mxu0 %v341
        %v686 = vpop.f32.mrb[0].mxu0
        %v687 = vadd.f32 %v616, %v686
        %v688 = vpop.f32.mrb[0].mxu0
        %v689 = vadd.f32 %v618, %v688
        %690 = vdwg.mxu0
        %691 = vmatprep.subr.mxu0 %v474
        %692 = vmatpush1.msra.mxu0 %v473
        %693 = vmatprep.subr.mxu0 %v476
        %694 = vmatpush1.msra.mxu0 %v475
        %695 = vmatprep.subr.mxu0 %v478
        %696 = vmatpush1.msra.mxu0 %v477
        %697 = vmatprep.subr.mxu0 %v480
        %698 = vmatpush1.msra.mxu0 %v479
        %699 = vmatprep.subr.mxu0 %v482
        %700 = vmatpush1.msra.mxu0 %v481
        %701 = vmatprep.subr.mxu0 %v484
        %702 = vmatpush1.msra.mxu0 %v483
        %703 = vmatprep.subr.mxu0 %v486
        %704 = vmatpush1.msra.mxu0 %v485
        %705 = vmatprep.subr.mxu0 %v488
        %706 = vmatpush1.msra.mxu0 %v487
        %707 = vmatprep.subr.mxu0 %v490
        %708 = vmatpush1.msra.mxu0 %v489
        %709 = vmatprep.subr.mxu0 %v492
        %710 = vmatpush1.msra.mxu0 %v491
        %711 = vmatprep.subr.mxu0 %v494
        %712 = vmatpush1.msra.mxu0 %v493
        %713 = vmatprep.subr.mxu0 %v496
        %714 = vmatpush1.msra.mxu0 %v495
        %715 = vmatprep.subr.mxu0 %v498
        %716 = vmatpush1.msra.mxu0 %v497
        %717 = vmatprep.subr.mxu0 %v500
        %718 = vmatpush1.msra.mxu0 %v499
        %719 = vmatprep.subr.mxu0 %v502
        %720 = vmatpush1.msra.mxu0 %v501
        %721 = vmatprep.subr.mxu0 %v504
        %722 = vmatpush1.msra.mxu0 %v503
        %723 = vmatprep.subr.mxu0 %v506
        %724 = vmatpush1.msra.mxu0 %v505
        %725 = vmatprep.subr.mxu0 %v508
        %726 = vmatpush1.msra.mxu0 %v507
        %727 = vmatprep.subr.mxu0 %v510
        %728 = vmatpush1.msra.mxu0 %v509
        %729 = vmatprep.subr.mxu0 %v512
        %730 = vmatpush1.msra.mxu0 %v511
        %731 = vmatprep.subr.mxu0 %v514
        %732 = vmatpush1.msra.mxu0 %v513
        %733 = vmatprep.subr.mxu0 %v516
        %734 = vmatpush1.msra.mxu0 %v515
        %735 = vmatprep.subr.mxu0 %v518
        %736 = vmatpush1.msra.mxu0 %v517
        %737 = vmatprep.subr.mxu0 %v520
        %738 = vmatpush1.msra.mxu0 %v519
        %739 = vmatprep.subr.mxu0 %v522
        %740 = vmatpush1.msra.mxu0 %v521
        %741 = vmatprep.subr.mxu0 %v524
        %742 = vmatpush1.msra.mxu0 %v523
        %743 = vmatprep.subr.mxu0 %v526
        %744 = vmatpush1.msra.mxu0 %v525
        %745 = vmatprep.subr.mxu0 %v528
        %746 = vmatpush1.msra.mxu0 %v527
        %747 = vmatprep.subr.mxu0 %v530
        %748 = vmatpush1.msra.mxu0 %v529
        %749 = vmatprep.subr.mxu0 %v532
        %750 = vmatpush1.msra.mxu0 %v531
        %751 = vmatprep.subr.mxu0 %v534
        %752 = vmatpush1.msra.mxu0 %v533
        %753 = vmatprep.subr.mxu0 %v536
        %754 = vmatpush1.msra.mxu0 %v535
        %755 = vmatprep.mubr.f32.mxu0 %v344
        %756 = vmatmul.mubr.f32.gmra.mrb[0].mxu0 %v343
        %v757 = vpop.f32.mrb[0].mxu0
        %v758 = vadd.f32 %v687, %v757
        %v759 = vpop.f32.mrb[0].mxu0
        %v760 = vadd.f32 %v689, %v759
        %761 = vdwg.mxu0
        %v762 = vld [vmem:[#allocation7] sm:$0xff]
        %v763 = vld [vmem:[#allocation7 + $0x8] sm:$0xff]
        %v764 = vld [vmem:[#allocation7 + $0x10] sm:$0xff]
        %v765 = vld [vmem:[#allocation7 + $0x18] sm:$0xff]
        %v766 = vld [vmem:[#allocation7 + $0x20] sm:$0xff]
        %v767 = vld [vmem:[#allocation7 + $0x28] sm:$0xff]
        %v768 = vld [vmem:[#allocation7 + $0x30] sm:$0xff]
        %v769 = vld [vmem:[#allocation7 + $0x38] sm:$0xff]
        %v770 = vld [vmem:[#allocation7 + $0x40] sm:$0xff]
        %v771 = vld [vmem:[#allocation7 + $0x48] sm:$0xff]
        %v772 = vld [vmem:[#allocation7 + $0x50] sm:$0xff]
        %v773 = vld [vmem:[#allocation7 + $0x58] sm:$0xff]
        %v774 = vld [vmem:[#allocation7 + $0x60] sm:$0xff]
        %v775 = vld [vmem:[#allocation7 + $0x68] sm:$0xff]
        %v776 = vld [vmem:[#allocation7 + $0x70] sm:$0xff]
        %v777 = vld [vmem:[#allocation7 + $0x78] sm:$0xff]
        %v778 = vld [vmem:[#allocation7 + $0x80] sm:$0xff]
        %v779 = vld [vmem:[#allocation7 + $0x88] sm:$0xff]
        %v780 = vld [vmem:[#allocation7 + $0x90] sm:$0xff]
        %v781 = vld [vmem:[#allocation7 + $0x98] sm:$0xff]
        %v782 = vld [vmem:[#allocation7 + $0xa0] sm:$0xff]
        %v783 = vld [vmem:[#allocation7 + $0xa8] sm:$0xff]
        %v784 = vld [vmem:[#allocation7 + $0xb0] sm:$0xff]
        %v785 = vld [vmem:[#allocation7 + $0xb8] sm:$0xff]
        %v786 = vld [vmem:[#allocation7 + $0xc0] sm:$0xff]
        %v787 = vld [vmem:[#allocation7 + $0xc8] sm:$0xff]
        %v788 = vld [vmem:[#allocation7 + $0xd0] sm:$0xff]
        %v789 = vld [vmem:[#allocation7 + $0xd8] sm:$0xff]
        %v790 = vld [vmem:[#allocation7 + $0xe0] sm:$0xff]
        %v791 = vld [vmem:[#allocation7 + $0xe8] sm:$0xff]
        %v792 = vld [vmem:[#allocation7 + $0xf0] sm:$0xff]
        %v793 = vld [vmem:[#allocation7 + $0xf8] sm:$0xff]
        %v794 = vld [vmem:[#allocation7 + $0x100] sm:$0xff]
        %v795 = vld [vmem:[#allocation7 + $0x108] sm:$0xff]
        %v796 = vld [vmem:[#allocation7 + $0x110] sm:$0xff]
        %v797 = vld [vmem:[#allocation7 + $0x118] sm:$0xff]
        %v798 = vld [vmem:[#allocation7 + $0x120] sm:$0xff]
        %v799 = vld [vmem:[#allocation7 + $0x128] sm:$0xff]
        %v800 = vld [vmem:[#allocation7 + $0x130] sm:$0xff]
        %v801 = vld [vmem:[#allocation7 + $0x138] sm:$0xff]
        %v802 = vld [vmem:[#allocation7 + $0x140] sm:$0xff]
        %v803 = vld [vmem:[#allocation7 + $0x148] sm:$0xff]
        %v804 = vld [vmem:[#allocation7 + $0x150] sm:$0xff]
        %v805 = vld [vmem:[#allocation7 + $0x158] sm:$0xff]
        %v806 = vld [vmem:[#allocation7 + $0x160] sm:$0xff]
        %v807 = vld [vmem:[#allocation7 + $0x168] sm:$0xff]
        %v808 = vld [vmem:[#allocation7 + $0x170] sm:$0xff]
        %v809 = vld [vmem:[#allocation7 + $0x178] sm:$0xff]
        %v810 = vld [vmem:[#allocation7 + $0x180] sm:$0xff]
        %v811 = vld [vmem:[#allocation7 + $0x188] sm:$0xff]
        %v812 = vld [vmem:[#allocation7 + $0x190] sm:$0xff]
        %v813 = vld [vmem:[#allocation7 + $0x198] sm:$0xff]
        %v814 = vld [vmem:[#allocation7 + $0x1a0] sm:$0xff]
        %v815 = vld [vmem:[#allocation7 + $0x1a8] sm:$0xff]
        %v816 = vld [vmem:[#allocation7 + $0x1b0] sm:$0xff]
        %v817 = vld [vmem:[#allocation7 + $0x1b8] sm:$0xff]
        %v818 = vld [vmem:[#allocation7 + $0x1c0] sm:$0xff]
        %v819 = vld [vmem:[#allocation7 + $0x1c8] sm:$0xff]
        %v820 = vld [vmem:[#allocation7 + $0x1d0] sm:$0xff]
        %v821 = vld [vmem:[#allocation7 + $0x1d8] sm:$0xff]
        %v822 = vld [vmem:[#allocation7 + $0x1e0] sm:$0xff]
        %v823 = vld [vmem:[#allocation7 + $0x1e8] sm:$0xff]
        %v824 = vld [vmem:[#allocation7 + $0x1f0] sm:$0xff]
        %v825 = vld [vmem:[#allocation7 + $0x1f8] sm:$0xff]
        %v826 = vld [vmem:[%s4] sm:$0x3]
        %v828 = vlaneseq
        %v829 = vshrl.u32 %v828, 7
        %v830 = vsub.s32 0, %v829
        %v831 = vrot.slane %v826, %v830
        %v832 = vlaneseq
        %v833 = vshrl.u32 %v832, 7
        %v834 = vsub.s32 1, %v833
        %v835 = vrot.slane %v826, %v834
        %838 = vmatprep.subr.mxu0 %v763
        %839 = vmatpush1.msra.mxu0 %v762
        %840 = vmatprep.subr.mxu0 %v765
        %841 = vmatpush1.msra.mxu0 %v764
        %842 = vmatprep.subr.mxu0 %v767
        %843 = vmatpush1.msra.mxu0 %v766
        %844 = vmatprep.subr.mxu0 %v769
        %845 = vmatpush1.msra.mxu0 %v768
        %846 = vmatprep.subr.mxu0 %v771
        %847 = vmatpush1.msra.mxu0 %v770
        %848 = vmatprep.subr.mxu0 %v773
        %849 = vmatpush1.msra.mxu0 %v772
        %850 = vmatprep.subr.mxu0 %v775
        %851 = vmatpush1.msra.mxu0 %v774
        %852 = vmatprep.subr.mxu0 %v777
        %853 = vmatpush1.msra.mxu0 %v776
        %854 = vmatprep.subr.mxu0 %v779
        %855 = vmatpush1.msra.mxu0 %v778
        %856 = vmatprep.subr.mxu0 %v781
        %857 = vmatpush1.msra.mxu0 %v780
        %858 = vmatprep.subr.mxu0 %v783
        %859 = vmatpush1.msra.mxu0 %v782
        %860 = vmatprep.subr.mxu0 %v785
        %861 = vmatpush1.msra.mxu0 %v784
        %862 = vmatprep.subr.mxu0 %v787
        %863 = vmatpush1.msra.mxu0 %v786
        %864 = vmatprep.subr.mxu0 %v789
        %865 = vmatpush1.msra.mxu0 %v788
        %866 = vmatprep.subr.mxu0 %v791
        %867 = vmatpush1.msra.mxu0 %v790
        %868 = vmatprep.subr.mxu0 %v793
        %869 = vmatpush1.msra.mxu0 %v792
        %870 = vmatprep.subr.mxu0 %v795
        %871 = vmatpush1.msra.mxu0 %v794
        %872 = vmatprep.subr.mxu0 %v797
        %873 = vmatpush1.msra.mxu0 %v796
        %874 = vmatprep.subr.mxu0 %v799
        %875 = vmatpush1.msra.mxu0 %v798
        %876 = vmatprep.subr.mxu0 %v801
        %877 = vmatpush1.msra.mxu0 %v800
        %878 = vmatprep.subr.mxu0 %v803
        %879 = vmatpush1.msra.mxu0 %v802
        %880 = vmatprep.subr.mxu0 %v805
        %881 = vmatpush1.msra.mxu0 %v804
        %882 = vmatprep.subr.mxu0 %v807
        %883 = vmatpush1.msra.mxu0 %v806
        %884 = vmatprep.subr.mxu0 %v809
        %885 = vmatpush1.msra.mxu0 %v808
        %886 = vmatprep.subr.mxu0 %v811
        %887 = vmatpush1.msra.mxu0 %v810
        %888 = vmatprep.subr.mxu0 %v813
        %889 = vmatpush1.msra.mxu0 %v812
        %890 = vmatprep.subr.mxu0 %v815
        %891 = vmatpush1.msra.mxu0 %v814
        %892 = vmatprep.subr.mxu0 %v817
        %893 = vmatpush1.msra.mxu0 %v816
        %894 = vmatprep.subr.mxu0 %v819
        %895 = vmatpush1.msra.mxu0 %v818
        %896 = vmatprep.subr.mxu0 %v821
        %897 = vmatpush1.msra.mxu0 %v820
        %898 = vmatprep.subr.mxu0 %v823
        %899 = vmatpush1.msra.mxu0 %v822
        %900 = vmatprep.subr.mxu0 %v825
        %901 = vmatpush1.msra.mxu0 %v824
        %902 = vmatprep.mubr.f32.mxu0 %v760
        %903 = vmatmul.mubr.f32.gmra.mrb[0].mxu0 %v758
        %v904 = vpop.f32.mrb[0].mxu0
        %v905 = vadd.f32 %v831, %v904
        %v906 = vpop.f32.mrb[0].mxu0
        %v907 = vadd.f32 %v835, %v906
        %908 = vdwg.mxu0
        %v909 = vmax.f32 %v905, 0.0
        %v910 = vmax.f32 %v907, 0.0
        %v911 = vld [vmem:[#allocation8] sm:$0xff]
        %v912 = vld [vmem:[#allocation8 + $0x8] sm:$0xff]
        %v913 = vld [vmem:[#allocation8 + $0x10] sm:$0xff]
        %v914 = vld [vmem:[#allocation8 + $0x18] sm:$0xff]
        %v915 = vld [vmem:[#allocation8 + $0x20] sm:$0xff]
        %v916 = vld [vmem:[#allocation8 + $0x28] sm:$0xff]
        %v917 = vld [vmem:[#allocation8 + $0x30] sm:$0xff]
        %v918 = vld [vmem:[#allocation8 + $0x38] sm:$0xff]
        %v919 = vld [vmem:[#allocation8 + $0x40] sm:$0xff]
        %v920 = vld [vmem:[#allocation8 + $0x48] sm:$0xff]
        %v921 = vld [vmem:[#allocation8 + $0x50] sm:$0xff]
        %v922 = vld [vmem:[#allocation8 + $0x58] sm:$0xff]
        %v923 = vld [vmem:[#allocation8 + $0x60] sm:$0xff]
        %v924 = vld [vmem:[#allocation8 + $0x68] sm:$0xff]
        %v925 = vld [vmem:[#allocation8 + $0x70] sm:$0xff]
        %v926 = vld [vmem:[#allocation8 + $0x78] sm:$0xff]
        %v927 = vld [vmem:[#allocation8 + $0x80] sm:$0xff]
        %v928 = vld [vmem:[#allocation8 + $0x88] sm:$0xff]
        %v929 = vld [vmem:[#allocation8 + $0x90] sm:$0xff]
        %v930 = vld [vmem:[#allocation8 + $0x98] sm:$0xff]
        %v931 = vld [vmem:[#allocation8 + $0xa0] sm:$0xff]
        %v932 = vld [vmem:[#allocation8 + $0xa8] sm:$0xff]
        %v933 = vld [vmem:[#allocation8 + $0xb0] sm:$0xff]
        %v934 = vld [vmem:[#allocation8 + $0xb8] sm:$0xff]
        %v935 = vld [vmem:[#allocation8 + $0xc0] sm:$0xff]
        %v936 = vld [vmem:[#allocation8 + $0xc8] sm:$0xff]
        %v937 = vld [vmem:[#allocation8 + $0xd0] sm:$0xff]
        %v938 = vld [vmem:[#allocation8 + $0xd8] sm:$0xff]
        %v939 = vld [vmem:[#allocation8 + $0xe0] sm:$0xff]
        %v940 = vld [vmem:[#allocation8 + $0xe8] sm:$0xff]
        %v941 = vld [vmem:[#allocation8 + $0xf0] sm:$0xff]
        %v942 = vld [vmem:[#allocation8 + $0xf8] sm:$0xff]
        %v943 = vld [vmem:[%s6] sm:$0x1]
        %v945 = vlaneseq
        %v946 = vshrl.u32 %v945, 7
        %v947 = vsub.s32 0, %v946
        %v948 = vrot.slane %v943, %v947
        %950 = vmatprep.subr.mxu0 0.0
        %951 = vmatpush1.msra.mxu0 %v911
        %952 = vmatprep.subr.mxu0 0.0
        %953 = vmatpush1.msra.mxu0 %v912
        %954 = vmatprep.subr.mxu0 0.0
        %955 = vmatpush1.msra.mxu0 %v913
        %956 = vmatprep.subr.mxu0 0.0
        %957 = vmatpush1.msra.mxu0 %v914
        %958 = vmatprep.subr.mxu0 0.0
        %959 = vmatpush1.msra.mxu0 %v915
        %960 = vmatprep.subr.mxu0 0.0
        %961 = vmatpush1.msra.mxu0 %v916
        %962 = vmatprep.subr.mxu0 0.0
        %963 = vmatpush1.msra.mxu0 %v917
        %964 = vmatprep.subr.mxu0 0.0
        %965 = vmatpush1.msra.mxu0 %v918
        %966 = vmatprep.subr.mxu0 0.0
        %967 = vmatpush1.msra.mxu0 %v919
        %968 = vmatprep.subr.mxu0 0.0
        %969 = vmatpush1.msra.mxu0 %v920
        %970 = vmatprep.subr.mxu0 0.0
        %971 = vmatpush1.msra.mxu0 %v921
        %972 = vmatprep.subr.mxu0 0.0
        %973 = vmatpush1.msra.mxu0 %v922
        %974 = vmatprep.subr.mxu0 0.0
        %975 = vmatpush1.msra.mxu0 %v923
        %976 = vmatprep.subr.mxu0 0.0
        %977 = vmatpush1.msra.mxu0 %v924
        %978 = vmatprep.subr.mxu0 0.0
        %979 = vmatpush1.msra.mxu0 %v925
        %980 = vmatprep.subr.mxu0 0.0
        %981 = vmatpush1.msra.mxu0 %v926
        %982 = vmatprep.subr.mxu0 0.0
        %983 = vmatpush1.msra.mxu0 %v927
        %984 = vmatprep.subr.mxu0 0.0
        %985 = vmatpush1.msra.mxu0 %v928
        %986 = vmatprep.subr.mxu0 0.0
        %987 = vmatpush1.msra.mxu0 %v929
        %988 = vmatprep.subr.mxu0 0.0
        %989 = vmatpush1.msra.mxu0 %v930
        %990 = vmatprep.subr.mxu0 0.0
        %991 = vmatpush1.msra.mxu0 %v931
        %992 = vmatprep.subr.mxu0 0.0
        %993 = vmatpush1.msra.mxu0 %v932
        %994 = vmatprep.subr.mxu0 0.0
        %995 = vmatpush1.msra.mxu0 %v933
        %996 = vmatprep.subr.mxu0 0.0
        %997 = vmatpush1.msra.mxu0 %v934
        %998 = vmatprep.subr.mxu0 0.0
        %999 = vmatpush1.msra.mxu0 %v935
        %1000 = vmatprep.subr.mxu0 0.0
        %1001 = vmatpush1.msra.mxu0 %v936
        %1002 = vmatprep.subr.mxu0 0.0
        %1003 = vmatpush1.msra.mxu0 %v937
        %1004 = vmatprep.subr.mxu0 0.0
        %1005 = vmatpush1.msra.mxu0 %v938
        %1006 = vmatprep.subr.mxu0 0.0
        %1007 = vmatpush1.msra.mxu0 %v939
        %1008 = vmatprep.subr.mxu0 0.0
        %1009 = vmatpush1.msra.mxu0 %v940
        %1010 = vmatprep.subr.mxu0 0.0
        %1011 = vmatpush1.msra.mxu0 %v941
        %1012 = vmatprep.subr.mxu0 0.0
        %1013 = vmatpush1.msra.mxu0 %v942
        %1014 = vmatprep.mubr.f32.mxu0 %v910
        %1015 = vmatmul.mubr.f32.gmra.mrb[0].mxu0 %v909
        %v1016 = vpop.f32.mrb[0].mxu0
        %v1017 = vadd.f32 %v948, %v1016
        %v1018 = vpop.f32.mrb[0].mxu0
        %1019 = vdwg.mxu0
        %1020 = vst [vmem:[%s338] sm:$0xff] %v1017
        %s1021 = sand.u32 %s186, 1
        %s1022 = scalar_lea.sflag [#allocation4], %s1021
        %s1023 = sand.u32 %s186, 1
        %s1024 = smul.addr %s1023, 8
        %s1025 = scalar_lea.vmem [#allocation10], %s1024
        // Predicated region
        $region65: #{tpu_custom_call.1} parent=47 // pred_check
          %p1026 = pneg %p196
        $region66: #{tpu_custom_call.1} parent=47 // pred_check_branch
          %1028 = sbr.rel (%p1026) target = $region68
        $region67: #{tpu_custom_call.1} parent=47 // pred_region
          %s1030 = ssub.s32 128, 128
          %1031 = vsyncadd %s1022, %s1030
          %s1032 = smul.addr %s26, 128
          %s1033 = scalar_lea.hbm %s7, %s1032
          %s1035 = sshll.u32 %s1025, 4
          %s1036 = int_to_ptr.vmem [resolvable:$true] %s1035
          %1038 = dma.vmem_to_hbm [thread:$0]  %s1036, 128, %s1033, %s1022
        $region68: #{tpu_custom_call.1} parent=47 // pred_fallthru
          _
      $region48: #{tpu_custom_call.1} parent=5 // pred_fallthru
        _
      %p1039 = scmp.le.s32.totalorder 2, %s21
      // Predicated region
      $region69: #{tpu_custom_call.1} parent=5 // pred_check
        %p1040 = pneg %p1039
      $region70: #{tpu_custom_call.1} parent=5 // pred_check_branch
        %1042 = sbr.rel (%p1040) target = $region72
      $region71: #{tpu_custom_call.1} parent=5 // pred_region
        %s1043 = ssub.s32 %s21, 2
        // Predicated region
        $region73: #{tpu_custom_call.1} parent=71 // pred_check
          %p1044 = pneg %p202
        $region74: #{tpu_custom_call.1} parent=71 // pred_check_branch
          %1046 = sbr.rel (%p1044) target = $region76
        $region75: #{tpu_custom_call.1} parent=71 // pred_region
          %s1047 = sand.u32 %s187, 1
          %s1048 = scalar_lea.sflag [#allocation4], %s1047
          %s1049 = sand.u32 %s187, 1
          %s1050 = smul.addr %s1049, 8
          %s1051 = scalar_lea.vmem [#allocation10], %s1050
          %1052 = dma.done %s1048, 128
        $region76: #{tpu_custom_call.1} parent=71 // pred_fallthru
          _
      $region72: #{tpu_custom_call.1} parent=5 // pred_fallthru
        _
    $region6: #{tpu_custom_call.1} parent=1 // loop_footer
      %s25 = sadd.s32 1, %s21
    $region7: #{tpu_custom_call.1} parent=1 // loop_footer_branch
      %20 = sbr.rel target = $region3
    $region8: #{tpu_custom_call.1} parent=1 // loop_exit
      _
    %1053 = vsyncpa [#allocation3], 1
    %s1054 = scalar_lea.sflag [#allocation3], 1
    %1055 = vsyncpa %s1054, 1
    %1056 = vsyncpa [#allocation6], 1
    %1057 = vsyncpa [#allocation9], 1
    %1058 = vsyncpa [#allocation4], 1
    %s1059 = scalar_lea.sflag [#allocation4], 1
    %1060 = vsyncpa %s1059, 1

</llo_original>
